<compile_context>
chip_gen: v6e
topology: v6e:2x2x1
jax: 0.10.0
libtpu: 0.0.40
codegen_flags: <defaults>
</compile_context>

<pallas_src>
import jax
import jax.numpy as jnp
from jax import lax
from jax.experimental import pallas as pl
from jax.experimental.pallas import tpu as pltpu


def _round_up(n, m):
    return (n + m - 1) // m * m


def lstm_kernel(x_ref, wx_ref, wh_ref, b_ref, wp_ref, bp_ref, y_ref, gx_scr):
    """Single-invocation LSTM.

    x_ref : (T*Bp, I)      time-major, batch padded to a full sublane tile
    wx_ref: (I, 4H)        fused input->gate weights, gate order [g,i,f,o],
                           i/f/o columns pre-scaled by 0.5 (sigmoid-as-tanh)
    wh_ref: (H, 4H)        fused hidden->gate weights (same pre-scaling)
    b_ref : (1, 4H)        fused gate bias (same pre-scaling)
    wp_ref: (H, OUTp)      output projection (lane-padded to 128)
    bp_ref: (1, OUTp)
    y_ref : (Bp, OUTp)
    gx_scr: (T, Bp, 4H)    VMEM scratch: precomputed x@Wx + b for all steps
    """
    seq, batch, gate_w = gx_scr.shape
    hidden = wh_ref.shape[0]

    # Hoisted, fused input projection for every timestep at once: one
    # lane-dense (T*Bp, I) @ (I, 4H) MXU pass, off the serial path.  The
    # (T*Bp, 4H) -> (T, Bp, 4H) reshape is layout-free (Bp is a full 8-row
    # sublane tile, 4H is a 128-lane multiple).
    gx = (jnp.dot(x_ref[...], wx_ref[...], preferred_element_type=jnp.float32)
          + b_ref[...])
    gx_scr[...] = gx.reshape(seq, batch, gate_w)

    # Hoisted per-lane affine for the single-tanh activation trick:
    #   g-lanes:     tanh(z)            -> scale 1.0, offset 0.0
    #   i/f/o-lanes: 0.5*tanh(z/2)+0.5  -> scale 0.5, offset 0.5
    # (the /2 of the argument is already folded into Wx/Wh/b).
    lane = lax.broadcasted_iota(jnp.int32, (1, gate_w), 1)
    is_g = lane < hidden
    act_scale = jnp.where(is_g, jnp.float32(1.0), jnp.float32(0.5))
    act_offset = jnp.where(is_g, jnp.float32(0.0), jnp.float32(0.5))

    wh = wh_ref[...]  # hoisted load; constant across the recurrence
    h0 = jnp.zeros((batch, hidden), jnp.float32)
    c0 = jnp.zeros((batch, hidden), jnp.float32)

    # Adaptive unroll: full for short sequences, partial for long ones to
    # keep LLO scheduling visibility without imem / vreg-pressure blowup.
    unroll = True if seq <= 16 else 8

    def step(t, carry):
        h, c = carry
        # Single fused 128-lane matmul per recurrent step (f32 on purpose).
        gates = gx_scr[t] + jnp.dot(h, wh, preferred_element_type=jnp.float32)
        # One EUP tanh over the whole (Bp, 4H) block gives all four gates.
        act = jnp.tanh(gates) * act_scale + act_offset
        g = act[:, 0 * hidden:1 * hidden]
        i = act[:, 1 * hidden:2 * hidden]
        f = act[:, 2 * hidden:3 * hidden]
        o = act[:, 3 * hidden:4 * hidden]
        c_new = g * i + c * f
        h_new = jnp.tanh(c_new) * o
        return (h_new, c_new)

    h_final, _ = lax.fori_loop(0, seq, step, (h0, c0), unroll=unroll)

    y = (jnp.dot(h_final, wp_ref[...], preferred_element_type=jnp.float32)
         + bp_ref[...])
    y_ref[...] = y.astype(y_ref.dtype)


def fuse_params(params, output_dim):
    """(4,I,H)/(4,H,H)/(4,1,H)/(H,O)/(1,O) -> fused + pre-scaled + padded.

    Gate order along the 4H axis is [g, i, f, o].  The i/f/o columns of
    Wx/Wh/b are scaled by 0.5 so sigmoid(z) = 0.5*tanh(z/2) + 0.5 needs only
    a tanh plus a per-lane affine inside the kernel.
    """
    wx, wh, b, wp, bp = params
    gate_scale = (1.0, 0.5, 0.5, 0.5)  # [g, i, f, o]
    wx_f = jnp.concatenate([wx[k] * gate_scale[k] for k in range(4)], axis=1)
    wh_f = jnp.concatenate([wh[k] * gate_scale[k] for k in range(4)], axis=1)
    b_f = jnp.concatenate([b[k] * gate_scale[k] for k in range(4)], axis=1)
    out_pad = _round_up(output_dim, 128)
    wp_p = jnp.pad(wp, ((0, 0), (0, out_pad - output_dim)))
    bp_p = jnp.pad(bp, ((0, 0), (0, out_pad - output_dim)))
    return wx_f, wh_f, b_f, wp_p, bp_p


def lstm_forward(x, params, seq_length, input_dim, hidden_dim, output_dim):
    """x: (batch, seq_length, input_dim) or (batch, seq_length*input_dim)."""
    batch = x.shape[0]
    x = x.reshape(batch, seq_length, input_dim).astype(jnp.float32)

    b_pad = _round_up(max(batch, 8), 8)          # full sublane tile
    out_pad = _round_up(output_dim, 128)         # lane-dense output store

    # Time-major, batch-padded, flattened to 2-D so the whole input
    # projection is a single matmul inside the kernel.  At toy shapes this
    # wrapper-side transpose/pad is noise; at scale it should be folded into
    # a gridded in-kernel projection instead (see TODO at top).
    x_tm = jnp.transpose(x, (1, 0, 2))                              # (T, B, I)
    x_tm = jnp.pad(x_tm, ((0, 0), (0, b_pad - batch), (0, 0)))      # (T, Bp, I)
    x2 = x_tm.reshape(seq_length * b_pad, input_dim)                # (T*Bp, I)

    wx_f, wh_f, b_f, wp_p, bp_p = fuse_params(params, output_dim)

    vmem_spec = pl.BlockSpec(memory_space=pltpu.MemorySpace.VMEM)
    y_pad = pl.pallas_call(
        lstm_kernel,
        out_shape=jax.ShapeDtypeStruct((b_pad, out_pad), jnp.float32),
        in_specs=[vmem_spec] * 6,
        out_specs=vmem_spec,
        scratch_shapes=[
            pltpu.VMEM((seq_length, b_pad, 4 * hidden_dim), jnp.float32),
        ],
    )(x2, wx_f, wh_f, b_f, wp_p, bp_p)

    return y_pad[:batch, :output_dim]


def lstm_reference(x, params, seq_length, input_dim, hidden_dim, output_dim):
    """Pure-JAX reference matching the PyTorch forward exactly."""
    wx, wh, b, wp, bp = params
    batch = x.shape[0]
    x = x.reshape(batch, seq_length, input_dim).astype(jnp.float32)
    h = jnp.zeros((batch, hidden_dim), jnp.float32)
    c = jnp.zeros((batch, hidden_dim), jnp.float32)
    for t in range(seq_length):
        x_t = x[:, t, :]
        g = jnp.tanh(x_t @ wx[0] + h @ wh[0] + b[0])
        i = jax.nn.sigmoid(x_t @ wx[1] + h @ wh[1] + b[1])
        f = jax.nn.sigmoid(x_t @ wx[2] + h @ wh[2] + b[2])
        o = jax.nn.sigmoid(x_t @ wx[3] + h @ wh[3] + b[3])
        c = g * i + c * f
        h = jnp.tanh(c) * o
    return h @ wp + bp


def init_params(key, input_dim, hidden_dim, output_dim):
    ks = jax.random.split(key, 5)
    scale = 0.1
    wx = scale * jax.random.normal(ks[0], (4, input_dim, hidden_dim), jnp.float32)
    wh = scale * jax.random.normal(ks[1], (4, hidden_dim, hidden_dim), jnp.float32)
    b = scale * jax.random.normal(ks[2], (4, 1, hidden_dim), jnp.float32)
    wp = scale * jax.random.normal(ks[3], (hidden_dim, output_dim), jnp.float32)
    bp = scale * jax.random.normal(ks[4], (1, output_dim), jnp.float32)
    return wx, wh, b, wp, bp


if __name__ == "__main__":
    seq_length, input_dim, hidden_dim, output_dim = 8, 16, 32, 10
    batch = 2

    key = jax.random.PRNGKey(0)
    k_x, k_p = jax.random.split(key)
    x = jax.random.normal(k_x, (batch, seq_length, input_dim), jnp.float32)
    params = init_params(k_p, input_dim, hidden_dim, output_dim)

    y = lstm_forward(x, params, seq_length, input_dim, hidden_dim, output_dim)
    y = jax.block_until_ready(y)

    y_ref = lstm_reference(x, params, seq_length, input_dim, hidden_dim,
                           output_dim)
    assert y.shape == (batch, output_dim)
    assert jnp.allclose(y, y_ref, atol=1e-5, rtol=1e-5), "mismatch vs reference"

    print("KERNEL_OK")
</pallas_src>

<mosaic_0001>
module attributes {stable_mosaic.version = 11 : i64} {
  func.func @lstm_kernel(%arg0: memref<64x16xf32, #tpu.memory_space<vmem>>, %arg1: memref<16x128xf32, #tpu.memory_space<vmem>>, %arg2: memref<32x128xf32, #tpu.memory_space<vmem>>, %arg3: memref<1x128xf32, #tpu.memory_space<vmem>>, %arg4: memref<32x128xf32, #tpu.memory_space<vmem>>, %arg5: memref<1x128xf32, #tpu.memory_space<vmem>>, %arg6: memref<8x128xf32, #tpu.memory_space<vmem>>, %arg7: memref<8x8x128xf32, #tpu.memory_space<vmem>>) attributes {dimension_semantics = [], scalar_prefetch = 0 : i64, scratch_operands = 1 : i64, tpu.core_type = #tpu.core_type<tc>} {
    %c0 = arith.constant 0 : index
    %c0_0 = arith.constant 0 : index
    %0 = vector.load %arg0[%c0, %c0_0] : memref<64x16xf32, #tpu.memory_space<vmem>>, vector<64x16xf32>
    %c0_1 = arith.constant 0 : index
    %c0_2 = arith.constant 0 : index
    %1 = vector.load %arg1[%c0_1, %c0_2] : memref<16x128xf32, #tpu.memory_space<vmem>>, vector<16x128xf32>
    %cst = arith.constant dense<0.000000e+00> : vector<64x128xf32>
    %2 = tpu.matmul %0, %1, %cst {dimension_numbers = #tpu.dot_dimension_numbers<[1], [0], [0], [1], [0, 0, 1, 1], [], []>} : vector<64x16xf32>, vector<16x128xf32>, vector<64x128xf32> -> vector<64x128xf32>
    %c0_3 = arith.constant 0 : index
    %c0_4 = arith.constant 0 : index
    %3 = vector.load %arg3[%c0_3, %c0_4] : memref<1x128xf32, #tpu.memory_space<vmem>>, vector<1x128xf32>
    %4 = vector.broadcast %3 : vector<1x128xf32> to vector<64x128xf32>
    %5 = arith.addf %2, %4 : vector<64x128xf32>
    %6 = vector.shape_cast %5 : vector<64x128xf32> to vector<8x8x128xf32>
    %c0_5 = arith.constant 0 : index
    %c0_6 = arith.constant 0 : index
    %c0_7 = arith.constant 0 : index
    %7 = vector.load %arg7[%c0_5, %c0_6, %c0_7] : memref<8x8x128xf32, #tpu.memory_space<vmem>>, vector<8x8x128xf32>
    tpu.vector_store %arg7[%c0_5, %c0_6, %c0_7], %6 {strides = array<i32>} : memref<8x8x128xf32, #tpu.memory_space<vmem>>, vector<8x8x128xf32>,
    %8 = tpu.iota {dimensions = array<i32: 1>} : vector<1x128xi32>
    %c32_i32 = arith.constant 32 : i32
    %9 = vector.broadcast %c32_i32 : i32 to vector<1x128xi32>
    %10 = arith.cmpi slt, %8, %9 : vector<1x128xi32>
    %cst_8 = arith.constant 1.000000e+00 : f32
    %cst_9 = arith.constant 5.000000e-01 : f32
    %11 = vector.broadcast %cst_8 : f32 to vector<1x128xf32>
    %12 = vector.broadcast %cst_9 : f32 to vector<1x128xf32>
    %13 = arith.select %10, %11, %12 : vector<1x128xi1>, vector<1x128xf32>
    %cst_10 = arith.constant 0.000000e+00 : f32
    %cst_11 = arith.constant 5.000000e-01 : f32
    %14 = vector.broadcast %cst_10 : f32 to vector<1x128xf32>
    %15 = vector.broadcast %cst_11 : f32 to vector<1x128xf32>
    %16 = arith.select %10, %14, %15 : vector<1x128xi1>, vector<1x128xf32>
    %c0_12 = arith.constant 0 : index
    %c0_13 = arith.constant 0 : index
    %17 = vector.load %arg2[%c0_12, %c0_13] : memref<32x128xf32, #tpu.memory_space<vmem>>, vector<32x128xf32>
    %cst_14 = arith.constant 0.000000e+00 : f32
    %18 = vector.broadcast %cst_14 : f32 to vector<8x32xf32>
    %cst_15 = arith.constant 0.000000e+00 : f32
    %19 = vector.broadcast %cst_15 : f32 to vector<8x32xf32>
    %c0_i32 = arith.constant 0 : i32
    %20 = arith.index_cast %c0_i32 : i32 to index
    %c0_16 = arith.constant 0 : index
    %c0_17 = arith.constant 0 : index
    %21 = vector.load %arg7[%20, %c0_16, %c0_17] : memref<8x8x128xf32, #tpu.memory_space<vmem>>, vector<1x8x128xf32>
    %22 = vector.shape_cast %21 : vector<1x8x128xf32> to vector<8x128xf32>
    %cst_18 = arith.constant dense<0.000000e+00> : vector<8x128xf32>
    %23 = tpu.matmul %18, %17, %cst_18 {dimension_numbers = #tpu.dot_dimension_numbers<[1], [0], [0], [1], [0, 0, 1, 1], [], []>} : vector<8x32xf32>, vector<32x128xf32>, vector<8x128xf32> -> vector<8x128xf32>
    %24 = arith.addf %22, %23 : vector<8x128xf32>
    %25 = math.tanh %24 : vector<8x128xf32>
    %26 = vector.broadcast %13 : vector<1x128xf32> to vector<8x128xf32>
    %27 = arith.mulf %25, %26 : vector<8x128xf32>
    %28 = vector.broadcast %16 : vector<1x128xf32> to vector<8x128xf32>
    %29 = arith.addf %27, %28 : vector<8x128xf32>
    %30 = vector.extract_strided_slice %29 {offsets = [0, 0], sizes = [8, 32], strides = [1, 1]} : vector<8x128xf32> to vector<8x32xf32>
    %31 = vector.extract_strided_slice %29 {offsets = [0, 32], sizes = [8, 32], strides = [1, 1]} : vector<8x128xf32> to vector<8x32xf32>
    %32 = vector.extract_strided_slice %29 {offsets = [0, 64], sizes = [8, 32], strides = [1, 1]} : vector<8x128xf32> to vector<8x32xf32>
    %33 = vector.extract_strided_slice %29 {offsets = [0, 96], sizes = [8, 32], strides = [1, 1]} : vector<8x128xf32> to vector<8x32xf32>
    %34 = arith.mulf %30, %31 : vector<8x32xf32>
    %35 = arith.mulf %19, %32 : vector<8x32xf32>
    %36 = arith.addf %34, %35 : vector<8x32xf32>
    %37 = math.tanh %36 : vector<8x32xf32>
    %38 = arith.mulf %37, %33 : vector<8x32xf32>
    %c1_i32 = arith.constant 1 : i32
    %39 = arith.index_cast %c1_i32 : i32 to index
    %c0_19 = arith.constant 0 : index
    %c0_20 = arith.constant 0 : index
    %40 = vector.load %arg7[%39, %c0_19, %c0_20] : memref<8x8x128xf32, #tpu.memory_space<vmem>>, vector<1x8x128xf32>
    %41 = vector.shape_cast %40 : vector<1x8x128xf32> to vector<8x128xf32>
    %cst_21 = arith.constant dense<0.000000e+00> : vector<8x128xf32>
    %42 = tpu.matmul %38, %17, %cst_21 {dimension_numbers = #tpu.dot_dimension_numbers<[1], [0], [0], [1], [0, 0, 1, 1], [], []>} : vector<8x32xf32>, vector<32x128xf32>, vector<8x128xf32> -> vector<8x128xf32>
    %43 = arith.addf %41, %42 : vector<8x128xf32>
    %44 = math.tanh %43 : vector<8x128xf32>
    %45 = vector.broadcast %13 : vector<1x128xf32> to vector<8x128xf32>
    %46 = arith.mulf %44, %45 : vector<8x128xf32>
    %47 = vector.broadcast %16 : vector<1x128xf32> to vector<8x128xf32>
    %48 = arith.addf %46, %47 : vector<8x128xf32>
    %49 = vector.extract_strided_slice %48 {offsets = [0, 0], sizes = [8, 32], strides = [1, 1]} : vector<8x128xf32> to vector<8x32xf32>
    %50 = vector.extract_strided_slice %48 {offsets = [0, 32], sizes = [8, 32], strides = [1, 1]} : vector<8x128xf32> to vector<8x32xf32>
    %51 = vector.extract_strided_slice %48 {offsets = [0, 64], sizes = [8, 32], strides = [1, 1]} : vector<8x128xf32> to vector<8x32xf32>
    %52 = vector.extract_strided_slice %48 {offsets = [0, 96], sizes = [8, 32], strides = [1, 1]} : vector<8x128xf32> to vector<8x32xf32>
    %53 = arith.mulf %49, %50 : vector<8x32xf32>
    %54 = arith.mulf %36, %51 : vector<8x32xf32>
    %55 = arith.addf %53, %54 : vector<8x32xf32>
    %56 = math.tanh %55 : vector<8x32xf32>
    %57 = arith.mulf %56, %52 : vector<8x32xf32>
    %c2_i32 = arith.constant 2 : i32
    %58 = arith.index_cast %c2_i32 : i32 to index
    %c0_22 = arith.constant 0 : index
    %c0_23 = arith.constant 0 : index
    %59 = vector.load %arg7[%58, %c0_22, %c0_23] : memref<8x8x128xf32, #tpu.memory_space<vmem>>, vector<1x8x128xf32>
    %60 = vector.shape_cast %59 : vector<1x8x128xf32> to vector<8x128xf32>
    %cst_24 = arith.constant dense<0.000000e+00> : vector<8x128xf32>
    %61 = tpu.matmul %57, %17, %cst_24 {dimension_numbers = #tpu.dot_dimension_numbers<[1], [0], [0], [1], [0, 0, 1, 1], [], []>} : vector<8x32xf32>, vector<32x128xf32>, vector<8x128xf32> -> vector<8x128xf32>
    %62 = arith.addf %60, %61 : vector<8x128xf32>
    %63 = math.tanh %62 : vector<8x128xf32>
    %64 = vector.broadcast %13 : vector<1x128xf32> to vector<8x128xf32>
    %65 = arith.mulf %63, %64 : vector<8x128xf32>
    %66 = vector.broadcast %16 : vector<1x128xf32> to vector<8x128xf32>
    %67 = arith.addf %65, %66 : vector<8x128xf32>
    %68 = vector.extract_strided_slice %67 {offsets = [0, 0], sizes = [8, 32], strides = [1, 1]} : vector<8x128xf32> to vector<8x32xf32>
    %69 = vector.extract_strided_slice %67 {offsets = [0, 32], sizes = [8, 32], strides = [1, 1]} : vector<8x128xf32> to vector<8x32xf32>
    %70 = vector.extract_strided_slice %67 {offsets = [0, 64], sizes = [8, 32], strides = [1, 1]} : vector<8x128xf32> to vector<8x32xf32>
    %71 = vector.extract_strided_slice %67 {offsets = [0, 96], sizes = [8, 32], strides = [1, 1]} : vector<8x128xf32> to vector<8x32xf32>
    %72 = arith.mulf %68, %69 : vector<8x32xf32>
    %73 = arith.mulf %55, %70 : vector<8x32xf32>
    %74 = arith.addf %72, %73 : vector<8x32xf32>
    %75 = math.tanh %74 : vector<8x32xf32>
    %76 = arith.mulf %75, %71 : vector<8x32xf32>
    %c3_i32 = arith.constant 3 : i32
    %77 = arith.index_cast %c3_i32 : i32 to index
    %c0_25 = arith.constant 0 : index
    %c0_26 = arith.constant 0 : index
    %78 = vector.load %arg7[%77, %c0_25, %c0_26] : memref<8x8x128xf32, #tpu.memory_space<vmem>>, vector<1x8x128xf32>
    %79 = vector.shape_cast %78 : vector<1x8x128xf32> to vector<8x128xf32>
    %cst_27 = arith.constant dense<0.000000e+00> : vector<8x128xf32>
    %80 = tpu.matmul %76, %17, %cst_27 {dimension_numbers = #tpu.dot_dimension_numbers<[1], [0], [0], [1], [0, 0, 1, 1], [], []>} : vector<8x32xf32>, vector<32x128xf32>, vector<8x128xf32> -> vector<8x128xf32>
    %81 = arith.addf %79, %80 : vector<8x128xf32>
    %82 = math.tanh %81 : vector<8x128xf32>
    %83 = vector.broadcast %13 : vector<1x128xf32> to vector<8x128xf32>
    %84 = arith.mulf %82, %83 : vector<8x128xf32>
    %85 = vector.broadcast %16 : vector<1x128xf32> to vector<8x128xf32>
    %86 = arith.addf %84, %85 : vector<8x128xf32>
    %87 = vector.extract_strided_slice %86 {offsets = [0, 0], sizes = [8, 32], strides = [1, 1]} : vector<8x128xf32> to vector<8x32xf32>
    %88 = vector.extract_strided_slice %86 {offsets = [0, 32], sizes = [8, 32], strides = [1, 1]} : vector<8x128xf32> to vector<8x32xf32>
    %89 = vector.extract_strided_slice %86 {offsets = [0, 64], sizes = [8, 32], strides = [1, 1]} : vector<8x128xf32> to vector<8x32xf32>
    %90 = vector.extract_strided_slice %86 {offsets = [0, 96], sizes = [8, 32], strides = [1, 1]} : vector<8x128xf32> to vector<8x32xf32>
    %91 = arith.mulf %87, %88 : vector<8x32xf32>
    %92 = arith.mulf %74, %89 : vector<8x32xf32>
    %93 = arith.addf %91, %92 : vector<8x32xf32>
    %94 = math.tanh %93 : vector<8x32xf32>
    %95 = arith.mulf %94, %90 : vector<8x32xf32>
    %c4_i32 = arith.constant 4 : i32
    %96 = arith.index_cast %c4_i32 : i32 to index
    %c0_28 = arith.constant 0 : index
    %c0_29 = arith.constant 0 : index
    %97 = vector.load %arg7[%96, %c0_28, %c0_29] : memref<8x8x128xf32, #tpu.memory_space<vmem>>, vector<1x8x128xf32>
    %98 = vector.shape_cast %97 : vector<1x8x128xf32> to vector<8x128xf32>
    %cst_30 = arith.constant dense<0.000000e+00> : vector<8x128xf32>
    %99 = tpu.matmul %95, %17, %cst_30 {dimension_numbers = #tpu.dot_dimension_numbers<[1], [0], [0], [1], [0, 0, 1, 1], [], []>} : vector<8x32xf32>, vector<32x128xf32>, vector<8x128xf32> -> vector<8x128xf32>
    %100 = arith.addf %98, %99 : vector<8x128xf32>
    %101 = math.tanh %100 : vector<8x128xf32>
    %102 = vector.broadcast %13 : vector<1x128xf32> to vector<8x128xf32>
    %103 = arith.mulf %101, %102 : vector<8x128xf32>
    %104 = vector.broadcast %16 : vector<1x128xf32> to vector<8x128xf32>
    %105 = arith.addf %103, %104 : vector<8x128xf32>
    %106 = vector.extract_strided_slice %105 {offsets = [0, 0], sizes = [8, 32], strides = [1, 1]} : vector<8x128xf32> to vector<8x32xf32>
    %107 = vector.extract_strided_slice %105 {offsets = [0, 32], sizes = [8, 32], strides = [1, 1]} : vector<8x128xf32> to vector<8x32xf32>
    %108 = vector.extract_strided_slice %105 {offsets = [0, 64], sizes = [8, 32], strides = [1, 1]} : vector<8x128xf32> to vector<8x32xf32>
    %109 = vector.extract_strided_slice %105 {offsets = [0, 96], sizes = [8, 32], strides = [1, 1]} : vector<8x128xf32> to vector<8x32xf32>
    %110 = arith.mulf %106, %107 : vector<8x32xf32>
    %111 = arith.mulf %93, %108 : vector<8x32xf32>
    %112 = arith.addf %110, %111 : vector<8x32xf32>
    %113 = math.tanh %112 : vector<8x32xf32>
    %114 = arith.mulf %113, %109 : vector<8x32xf32>
    %c5_i32 = arith.constant 5 : i32
    %115 = arith.index_cast %c5_i32 : i32 to index
    %c0_31 = arith.constant 0 : index
    %c0_32 = arith.constant 0 : index
    %116 = vector.load %arg7[%115, %c0_31, %c0_32] : memref<8x8x128xf32, #tpu.memory_space<vmem>>, vector<1x8x128xf32>
    %117 = vector.shape_cast %116 : vector<1x8x128xf32> to vector<8x128xf32>
    %cst_33 = arith.constant dense<0.000000e+00> : vector<8x128xf32>
    %118 = tpu.matmul %114, %17, %cst_33 {dimension_numbers = #tpu.dot_dimension_numbers<[1], [0], [0], [1], [0, 0, 1, 1], [], []>} : vector<8x32xf32>, vector<32x128xf32>, vector<8x128xf32> -> vector<8x128xf32>
    %119 = arith.addf %117, %118 : vector<8x128xf32>
    %120 = math.tanh %119 : vector<8x128xf32>
    %121 = vector.broadcast %13 : vector<1x128xf32> to vector<8x128xf32>
    %122 = arith.mulf %120, %121 : vector<8x128xf32>
    %123 = vector.broadcast %16 : vector<1x128xf32> to vector<8x128xf32>
    %124 = arith.addf %122, %123 : vector<8x128xf32>
    %125 = vector.extract_strided_slice %124 {offsets = [0, 0], sizes = [8, 32], strides = [1, 1]} : vector<8x128xf32> to vector<8x32xf32>
    %126 = vector.extract_strided_slice %124 {offsets = [0, 32], sizes = [8, 32], strides = [1, 1]} : vector<8x128xf32> to vector<8x32xf32>
    %127 = vector.extract_strided_slice %124 {offsets = [0, 64], sizes = [8, 32], strides = [1, 1]} : vector<8x128xf32> to vector<8x32xf32>
    %128 = vector.extract_strided_slice %124 {offsets = [0, 96], sizes = [8, 32], strides = [1, 1]} : vector<8x128xf32> to vector<8x32xf32>
    %129 = arith.mulf %125, %126 : vector<8x32xf32>
    %130 = arith.mulf %112, %127 : vector<8x32xf32>
    %131 = arith.addf %129, %130 : vector<8x32xf32>
    %132 = math.tanh %131 : vector<8x32xf32>
    %133 = arith.mulf %132, %128 : vector<8x32xf32>
    %c6_i32 = arith.constant 6 : i32
    %134 = arith.index_cast %c6_i32 : i32 to index
    %c0_34 = arith.constant 0 : index
    %c0_35 = arith.constant 0 : index
    %135 = vector.load %arg7[%134, %c0_34, %c0_35] : memref<8x8x128xf32, #tpu.memory_space<vmem>>, vector<1x8x128xf32>
    %136 = vector.shape_cast %135 : vector<1x8x128xf32> to vector<8x128xf32>
    %cst_36 = arith.constant dense<0.000000e+00> : vector<8x128xf32>
    %137 = tpu.matmul %133, %17, %cst_36 {dimension_numbers = #tpu.dot_dimension_numbers<[1], [0], [0], [1], [0, 0, 1, 1], [], []>} : vector<8x32xf32>, vector<32x128xf32>, vector<8x128xf32> -> vector<8x128xf32>
    %138 = arith.addf %136, %137 : vector<8x128xf32>
    %139 = math.tanh %138 : vector<8x128xf32>
    %140 = vector.broadcast %13 : vector<1x128xf32> to vector<8x128xf32>
    %141 = arith.mulf %139, %140 : vector<8x128xf32>
    %142 = vector.broadcast %16 : vector<1x128xf32> to vector<8x128xf32>
    %143 = arith.addf %141, %142 : vector<8x128xf32>
    %144 = vector.extract_strided_slice %143 {offsets = [0, 0], sizes = [8, 32], strides = [1, 1]} : vector<8x128xf32> to vector<8x32xf32>
    %145 = vector.extract_strided_slice %143 {offsets = [0, 32], sizes = [8, 32], strides = [1, 1]} : vector<8x128xf32> to vector<8x32xf32>
    %146 = vector.extract_strided_slice %143 {offsets = [0, 64], sizes = [8, 32], strides = [1, 1]} : vector<8x128xf32> to vector<8x32xf32>
    %147 = vector.extract_strided_slice %143 {offsets = [0, 96], sizes = [8, 32], strides = [1, 1]} : vector<8x128xf32> to vector<8x32xf32>
    %148 = arith.mulf %144, %145 : vector<8x32xf32>
    %149 = arith.mulf %131, %146 : vector<8x32xf32>
    %150 = arith.addf %148, %149 : vector<8x32xf32>
    %151 = math.tanh %150 : vector<8x32xf32>
    %152 = arith.mulf %151, %147 : vector<8x32xf32>
    %c7_i32 = arith.constant 7 : i32
    %153 = arith.index_cast %c7_i32 : i32 to index
    %c0_37 = arith.constant 0 : index
    %c0_38 = arith.constant 0 : index
    %154 = vector.load %arg7[%153, %c0_37, %c0_38] : memref<8x8x128xf32, #tpu.memory_space<vmem>>, vector<1x8x128xf32>
    %155 = vector.shape_cast %154 : vector<1x8x128xf32> to vector<8x128xf32>
    %cst_39 = arith.constant dense<0.000000e+00> : vector<8x128xf32>
    %156 = tpu.matmul %152, %17, %cst_39 {dimension_numbers = #tpu.dot_dimension_numbers<[1], [0], [0], [1], [0, 0, 1, 1], [], []>} : vector<8x32xf32>, vector<32x128xf32>, vector<8x128xf32> -> vector<8x128xf32>
    %157 = arith.addf %155, %156 : vector<8x128xf32>
    %158 = math.tanh %157 : vector<8x128xf32>
    %159 = vector.broadcast %13 : vector<1x128xf32> to vector<8x128xf32>
    %160 = arith.mulf %158, %159 : vector<8x128xf32>
    %161 = vector.broadcast %16 : vector<1x128xf32> to vector<8x128xf32>
    %162 = arith.addf %160, %161 : vector<8x128xf32>
    %163 = vector.extract_strided_slice %162 {offsets = [0, 0], sizes = [8, 32], strides = [1, 1]} : vector<8x128xf32> to vector<8x32xf32>
    %164 = vector.extract_strided_slice %162 {offsets = [0, 32], sizes = [8, 32], strides = [1, 1]} : vector<8x128xf32> to vector<8x32xf32>
    %165 = vector.extract_strided_slice %162 {offsets = [0, 64], sizes = [8, 32], strides = [1, 1]} : vector<8x128xf32> to vector<8x32xf32>
    %166 = vector.extract_strided_slice %162 {offsets = [0, 96], sizes = [8, 32], strides = [1, 1]} : vector<8x128xf32> to vector<8x32xf32>
    %167 = arith.mulf %163, %164 : vector<8x32xf32>
    %168 = arith.mulf %150, %165 : vector<8x32xf32>
    %169 = arith.addf %167, %168 : vector<8x32xf32>
    %170 = math.tanh %169 : vector<8x32xf32>
    %171 = arith.mulf %170, %166 : vector<8x32xf32>
    %c8_i32 = arith.constant 8 : i32
    %c0_40 = arith.constant 0 : index
    %c0_41 = arith.constant 0 : index
    %172 = vector.load %arg4[%c0_40, %c0_41] : memref<32x128xf32, #tpu.memory_space<vmem>>, vector<32x128xf32>
    %cst_42 = arith.constant dense<0.000000e+00> : vector<8x128xf32>
    %173 = tpu.matmul %171, %172, %cst_42 {dimension_numbers = #tpu.dot_dimension_numbers<[1], [0], [0], [1], [0, 0, 1, 1], [], []>} : vector<8x32xf32>, vector<32x128xf32>, vector<8x128xf32> -> vector<8x128xf32>
    %c0_43 = arith.constant 0 : index
    %c0_44 = arith.constant 0 : index
    %174 = vector.load %arg5[%c0_43, %c0_44] : memref<1x128xf32, #tpu.memory_space<vmem>>, vector<1x128xf32>
    %175 = vector.broadcast %174 : vector<1x128xf32> to vector<8x128xf32>
    %176 = arith.addf %173, %175 : vector<8x128xf32>
    %c0_45 = arith.constant 0 : index
    %c0_46 = arith.constant 0 : index
    %177 = vector.load %arg6[%c0_45, %c0_46] : memref<8x128xf32, #tpu.memory_space<vmem>>, vector<8x128xf32>
    tpu.vector_store %arg6[%c0_45, %c0_46], %176 {strides = array<i32>} : memref<8x128xf32, #tpu.memory_space<vmem>>, vector<8x128xf32>,
    return
  }
}

</mosaic_0001>

<llo_original>
// kernel: tpu_custom_call.1
$region0: #{tpu_custom_call.1}
  #allocation0 [shape = 'u32[]', space=smem, size = 0x4, offset = 0x4, fixed_abs, tag = 'smem constant byte address 0x4 - core index']
  #allocation1 [shape = 'u32[144,128]{1,0:T(1,128)}', space=vmem, size = 0x12000, scoped, tag = 'internal scratch']
  #allocation2 [shape = 'f32[8,8,128]{2,1,0:T(8,128)}', space=vmem, size = 0x8000, scoped, tag = 'scratch operand']
  %s0 = inlined_call_operand.vmem [shape: f32[64,16], index: 0, kind: input, shape index: {}]
  %s1 = inlined_call_operand.vmem [shape: f32[16,128], index: 1, kind: input, shape index: {}]
  %s2 = inlined_call_operand.vmem [shape: f32[32,128], index: 2, kind: input, shape index: {}]
  %s3 = inlined_call_operand.vmem [shape: f32[1,128], index: 3, kind: input, shape index: {}]
  %s4 = inlined_call_operand.vmem [shape: f32[32,128], index: 4, kind: input, shape index: {}]
  %s5 = inlined_call_operand.vmem [shape: f32[1,128], index: 5, kind: input, shape index: {}]
  %s6 = inlined_call_operand.hbm [shape: f32[8,128], index: 6, kind: output, shape index: {}]
  %s7 = sld [smem:[#allocation0]]
  $region34: #{tpu_custom_call.1} parent=0
    _
  %s9 = ssub.s32 1, %s7
  %s10 = scalar_select 0, %s9, %s7
  $region1: #{tpu_custom_call.1} parent=0
    #allocation3 [shape = 'u8[4096]{0}', space=vmem, size = 0x1000, scoped, tag = 'output window, operand 0, single buffered']
    #allocation4 [shape = 's32[1]{0}', space=sflag, size = 0x4, scoped, tag = 'scoped memory for tpu_custom_call.1']
    %11 = vsyncpa [#allocation4], 0
    // Predicated region
    $region2: #{tpu_custom_call.1} parent=1 // pred_check
      _
    $region3: #{tpu_custom_call.1} parent=1 // pred_check_branch
      %13 = sbr.rel (0) target = $region5
    $region4: #{tpu_custom_call.1} parent=1 // pred_region
      _
    $region5: #{tpu_custom_call.1} parent=1 // pred_fallthru
      _
    // Predicated region
    $region6: #{tpu_custom_call.1} parent=1 // pred_check
      _
    $region7: #{tpu_custom_call.1} parent=1 // pred_check_branch
      %15 = sbr.rel (0) target = $region9
    $region8: #{tpu_custom_call.1} parent=1 // pred_region
      _
    $region9: #{tpu_custom_call.1} parent=1 // pred_fallthru
      _
    // Predicated region
    $region10: #{tpu_custom_call.1} parent=1 // pred_check
      _
    $region11: #{tpu_custom_call.1} parent=1 // pred_check_branch
      %17 = sbr.rel (0) target = $region13
    $region12: #{tpu_custom_call.1} parent=1 // pred_region
      _
    $region13: #{tpu_custom_call.1} parent=1 // pred_fallthru
      _
    // Predicated region
    $region14: #{tpu_custom_call.1} parent=1 // pred_check
      _
    $region15: #{tpu_custom_call.1} parent=1 // pred_check_branch
      %19 = sbr.rel (0) target = $region17
    $region16: #{tpu_custom_call.1} parent=1 // pred_region
      _
    $region17: #{tpu_custom_call.1} parent=1 // pred_fallthru
      _
    // Predicated region
    $region18: #{tpu_custom_call.1} parent=1 // pred_check
      _
    $region19: #{tpu_custom_call.1} parent=1 // pred_check_branch
      %21 = sbr.rel (0) target = $region21
    $region20: #{tpu_custom_call.1} parent=1 // pred_region
      _
    $region21: #{tpu_custom_call.1} parent=1 // pred_fallthru
      _
    // Predicated region
    $region22: #{tpu_custom_call.1} parent=1 // pred_check
      _
    $region23: #{tpu_custom_call.1} parent=1 // pred_check_branch
      %23 = sbr.rel (0) target = $region25
    $region24: #{tpu_custom_call.1} parent=1 // pred_region
      _
    $region25: #{tpu_custom_call.1} parent=1 // pred_fallthru
      _
    %v24 = vld [vmem:[%s0] sm:$0xff]
    %v25 = vld [vmem:[%s0 + $0x8] sm:$0xff]
    %v26 = vld [vmem:[%s0 + $0x10] sm:$0xff]
    %v27 = vld [vmem:[%s0 + $0x18] sm:$0xff]
    %v28 = vld [vmem:[%s0 + $0x20] sm:$0xff]
    %v29 = vld [vmem:[%s0 + $0x28] sm:$0xff]
    %v30 = vld [vmem:[%s0 + $0x30] sm:$0xff]
    %v31 = vld [vmem:[%s0 + $0x38] sm:$0xff]
    %v32 = vld [vmem:[%s1] sm:$0xff]
    %v33 = vld [vmem:[%s1 + $0x8] sm:$0xff]
    %v34 = vld [vmem:[%s3] sm:$0x1]
    %v36 = vlaneseq
    %v37 = vshrl.u32 %v36, 7
    %v38 = vsub.s32 0, %v37
    %v39 = vrot.slane %v34, %v38
    %vm41 = vcmask 130048
    %v43 = vsel %vm41, %v24, 0
    %v46 = vsel %vm41, %v25, 0
    %v49 = vsel %vm41, %v26, 0
    %v52 = vsel %vm41, %v27, 0
    %v55 = vsel %vm41, %v28, 0
    %v58 = vsel %vm41, %v29, 0
    %v61 = vsel %vm41, %v30, 0
    %v64 = vsel %vm41, %v31, 0
    %66 = vmatprep.subr.mxu0 0.0
    %67 = vmatpush1.msra.mxu0 0.0
    %68 = vmatprep.subr.mxu0 0.0
    %69 = vmatpush1.msra.mxu0 0.0
    %70 = vmatprep.subr.mxu0 0.0
    %71 = vmatpush1.msra.mxu0 0.0
    %72 = vmatprep.subr.mxu0 0.0
    %73 = vmatpush1.msra.mxu0 0.0
    %74 = vmatprep.subr.mxu0 0.0
    %75 = vmatpush1.msra.mxu0 0.0
    %76 = vmatprep.subr.mxu0 0.0
    %77 = vmatpush1.msra.mxu0 0.0
    %78 = vmatprep.subr.mxu0 0.0
    %79 = vmatpush1.msra.mxu0 0.0
    %80 = vmatprep.subr.mxu0 0.0
    %81 = vmatpush1.msra.mxu0 0.0
    %82 = vmatprep.subr.mxu0 0.0
    %83 = vmatpush1.msra.mxu0 0.0
    %84 = vmatprep.subr.mxu0 0.0
    %85 = vmatpush1.msra.mxu0 0.0
    %86 = vmatprep.subr.mxu0 0.0
    %87 = vmatpush1.msra.mxu0 0.0
    %88 = vmatprep.subr.mxu0 0.0
    %89 = vmatpush1.msra.mxu0 0.0
    %90 = vmatprep.subr.mxu0 0.0
    %91 = vmatpush1.msra.mxu0 0.0
    %92 = vmatprep.subr.mxu0 0.0
    %93 = vmatpush1.msra.mxu0 0.0
    %94 = vmatprep.subr.mxu0 0.0
    %95 = vmatpush1.msra.mxu0 %v33
    %96 = vmatprep.subr.mxu0 0.0
    %97 = vmatpush1.msra.mxu0 %v32
    %98 = vmatprep.subr.mxu0 0.0
    %99 = vmatpush2.msra.mxu0 0.0
    %100 = vmatprep.subr.mxu0 0.0
    %101 = vmatpush2.msra.mxu0 0.0
    %102 = vmatprep.subr.mxu0 0.0
    %103 = vmatpush2.msra.mxu0 0.0
    %104 = vmatprep.subr.mxu0 0.0
    %105 = vmatpush2.msra.mxu0 0.0
    %106 = vmatprep.subr.mxu0 0.0
    %107 = vmatpush2.msra.mxu0 0.0
    %108 = vmatprep.subr.mxu0 0.0
    %109 = vmatpush2.msra.mxu0 0.0
    %110 = vmatprep.subr.mxu0 0.0
    %111 = vmatpush2.msra.mxu0 0.0
    %112 = vmatprep.subr.mxu0 0.0
    %113 = vmatpush2.msra.mxu0 0.0
    %114 = vmatprep.subr.mxu0 0.0
    %115 = vmatpush2.msra.mxu0 0.0
    %116 = vmatprep.subr.mxu0 0.0
    %117 = vmatpush2.msra.mxu0 0.0
    %118 = vmatprep.subr.mxu0 0.0
    %119 = vmatpush2.msra.mxu0 0.0
    %120 = vmatprep.subr.mxu0 0.0
    %121 = vmatpush2.msra.mxu0 0.0
    %122 = vmatprep.subr.mxu0 0.0
    %123 = vmatpush2.msra.mxu0 0.0
    %124 = vmatprep.subr.mxu0 0.0
    %125 = vmatpush2.msra.mxu0 0.0
    %126 = vmatprep.subr.mxu0 0.0
    %127 = vmatpush2.msra.mxu0 0.0
    %128 = vmatprep.subr.mxu0 0.0
    %129 = vmatpush2.msra.mxu0 0.0
    %130 = vmatprep.mubr.f32.mxu0 0.0
    %131 = vmatmul.mubr.f32.gmra.mxu0 %v43
    %v132 = vpop.f32.mrf.mxu0
    %v133 = vadd.f32 %v39, %v132
    %v134 = vpop.f32.mrf.mxu0
    %135 = vmatprep.mubr.f32.mxu0 0.0
    %136 = vmatmul.mubr.f32.gmra.mxu0 %v46
    %v137 = vpop.f32.mrf.mxu0
    %v138 = vadd.f32 %v39, %v137
    %v139 = vpop.f32.mrf.mxu0
    %140 = vmatprep.mubr.f32.mxu0 0.0
    %141 = vmatmul.mubr.f32.gmra.mxu0 %v49
    %v142 = vpop.f32.mrf.mxu0
    %v143 = vadd.f32 %v39, %v142
    %v144 = vpop.f32.mrf.mxu0
    %145 = vmatprep.mubr.f32.mxu0 0.0
    %146 = vmatmul.mubr.f32.gmra.mxu0 %v52
    %v147 = vpop.f32.mrf.mxu0
    %v148 = vadd.f32 %v39, %v147
    %v149 = vpop.f32.mrf.mxu0
    %150 = vmatprep.mubr.f32.mxu0 0.0
    %151 = vmatmul.mubr.f32.gmra.mxu0 %v55
    %v152 = vpop.f32.mrf.mxu0
    %v153 = vadd.f32 %v39, %v152
    %v154 = vpop.f32.mrf.mxu0
    %155 = vmatprep.mubr.f32.mxu0 0.0
    %156 = vmatmul.mubr.f32.gmra.mxu0 %v58
    %v157 = vpop.f32.mrf.mxu0
    %v158 = vadd.f32 %v39, %v157
    %v159 = vpop.f32.mrf.mxu0
    %160 = vmatprep.mubr.f32.mxu0 0.0
    %161 = vmatmul.mubr.f32.gmra.mxu0 %v61
    %v162 = vpop.f32.mrf.mxu0
    %v163 = vadd.f32 %v39, %v162
    %v164 = vpop.f32.mrf.mxu0
    %165 = vmatprep.mubr.f32.mxu0 0.0
    %166 = vmatmul.mubr.f32.gmra.mxu0 %v64
    %v167 = vpop.f32.mrf.mxu0
    %v168 = vadd.f32 %v39, %v167
    %v169 = vpop.f32.mrf.mxu0
    %170 = vdwg.mxu0
    %171 = vst [vmem:[#allocation2] sm:$0xff] %v133
    %172 = vst [vmem:[#allocation2 + $0x8] sm:$0xff] %v138
    %173 = vst [vmem:[#allocation2 + $0x10] sm:$0xff] %v143
    %174 = vst [vmem:[#allocation2 + $0x18] sm:$0xff] %v148
    %175 = vst [vmem:[#allocation2 + $0x20] sm:$0xff] %v153
    %176 = vst [vmem:[#allocation2 + $0x28] sm:$0xff] %v158
    %177 = vst [vmem:[#allocation2 + $0x30] sm:$0xff] %v163
    %178 = vst [vmem:[#allocation2 + $0x38] sm:$0xff] %v168
    %v179 = vlaneseq
    %v180 = vand.u32 %v179, 127
    %vm181 = vcmp.lt.s32.totalorder %v180, 32
    %v182 = vsel %vm181, 1.0, 0.5
    %v183 = vsel %vm181, 0.0, 0.5
    %v184 = vld [vmem:[%s2] sm:$0xff]
    %v185 = vld [vmem:[%s2 + $0x8] sm:$0xff]
    %v186 = vld [vmem:[%s2 + $0x10] sm:$0xff]
    %v187 = vld [vmem:[%s2 + $0x18] sm:$0xff]
    %v188 = vld [vmem:[#allocation2] sm:$0xff]
    %vm189 = vcmask 261120
    %v191 = vsel %vm189, 0.0, 0
    %193 = vmatprep.subr.mxu0 0.0
    %194 = vmatpush1.msra.mxu0 0.0
    %195 = vmatprep.subr.mxu0 0.0
    %196 = vmatpush1.msra.mxu0 0.0
    %197 = vmatprep.subr.mxu0 0.0
    %198 = vmatpush1.msra.mxu0 0.0
    %199 = vmatprep.subr.mxu0 0.0
    %200 = vmatpush1.msra.mxu0 0.0
    %201 = vmatprep.subr.mxu0 0.0
    %202 = vmatpush1.msra.mxu0 0.0
    %203 = vmatprep.subr.mxu0 0.0
    %204 = vmatpush1.msra.mxu0 0.0
    %205 = vmatprep.subr.mxu0 0.0
    %206 = vmatpush1.msra.mxu0 0.0
    %207 = vmatprep.subr.mxu0 0.0
    %208 = vmatpush1.msra.mxu0 0.0
    %209 = vmatprep.subr.mxu0 0.0
    %210 = vmatpush1.msra.mxu0 0.0
    %211 = vmatprep.subr.mxu0 0.0
    %212 = vmatpush1.msra.mxu0 0.0
    %213 = vmatprep.subr.mxu0 0.0
    %214 = vmatpush1.msra.mxu0 0.0
    %215 = vmatprep.subr.mxu0 0.0
    %216 = vmatpush1.msra.mxu0 0.0
    %217 = vmatprep.subr.mxu0 0.0
    %218 = vmatpush1.msra.mxu0 %v187
    %219 = vmatprep.subr.mxu0 0.0
    %220 = vmatpush1.msra.mxu0 %v186
    %221 = vmatprep.subr.mxu0 0.0
    %222 = vmatpush1.msra.mxu0 %v185
    %223 = vmatprep.subr.mxu0 0.0
    %224 = vmatpush1.msra.mxu0 %v184
    %225 = vmatprep.subr.mxu0 0.0
    %226 = vmatpush2.msra.mxu0 0.0
    %227 = vmatprep.subr.mxu0 0.0
    %228 = vmatpush2.msra.mxu0 0.0
    %229 = vmatprep.subr.mxu0 0.0
    %230 = vmatpush2.msra.mxu0 0.0
    %231 = vmatprep.subr.mxu0 0.0
    %232 = vmatpush2.msra.mxu0 0.0
    %233 = vmatprep.subr.mxu0 0.0
    %234 = vmatpush2.msra.mxu0 0.0
    %235 = vmatprep.subr.mxu0 0.0
    %236 = vmatpush2.msra.mxu0 0.0
    %237 = vmatprep.subr.mxu0 0.0
    %238 = vmatpush2.msra.mxu0 0.0
    %239 = vmatprep.subr.mxu0 0.0
    %240 = vmatpush2.msra.mxu0 0.0
    %241 = vmatprep.subr.mxu0 0.0
    %242 = vmatpush2.msra.mxu0 0.0
    %243 = vmatprep.subr.mxu0 0.0
    %244 = vmatpush2.msra.mxu0 0.0
    %245 = vmatprep.subr.mxu0 0.0
    %246 = vmatpush2.msra.mxu0 0.0
    %247 = vmatprep.subr.mxu0 0.0
    %248 = vmatpush2.msra.mxu0 0.0
    %249 = vmatprep.subr.mxu0 0.0
    %250 = vmatpush2.msra.mxu0 0.0
    %251 = vmatprep.subr.mxu0 0.0
    %252 = vmatpush2.msra.mxu0 0.0
    %253 = vmatprep.subr.mxu0 0.0
    %254 = vmatpush2.msra.mxu0 0.0
    %255 = vmatprep.subr.mxu0 0.0
    %256 = vmatpush2.msra.mxu0 0.0
    %257 = vmatprep.mubr.f32.mxu0 0.0
    %258 = vmatmul.mubr.f32.gmra.mxu0 %v191
    %v259 = vpop.f32.mrf.mxu0
    %v260 = vadd.f32 0.0, %v259
    %v261 = vpop.f32.mrf.mxu0
    %262 = vdwg.mxu0
    %v263 = vadd.f32 %v188, %v260
    %v264 = vtanh.pop %v263
    %v265 = vmul.f32 %v264, %v182
    %v266 = vadd.f32 %v265, %v183
    %268 = vrot.lane.b32.xlu0 %v266, 96
    %v269 = vpop.permute.xlu0 %268
    %v271 = vmul.f32 %v266, %v269
    %v272 = vmul.f32 %v266, 0.0
    %274 = vrot.lane.b32.xlu0 %v272, 64
    %v275 = vpop.permute.xlu0 %274
    %v277 = vadd.f32 %v271, %v275
    %v278 = vtanh.pop %v277
    %279 = vrot.lane.b32.xlu0 %v266, 32
    %v280 = vpop.permute.xlu0 %279
    %v282 = vmul.f32 %v278, %v280
    %s283 = scalar_lea.vmem [#allocation2], 8
    %v284 = vld [vmem:[%s283] sm:$0xff]
    %v286 = vsel %vm189, %v282, 0
    %288 = vmatprep.subr.mxu0 0.0
    %289 = vmatpush1.msra.mxu0 0.0
    %290 = vmatprep.subr.mxu0 0.0
    %291 = vmatpush1.msra.mxu0 0.0
    %292 = vmatprep.subr.mxu0 0.0
    %293 = vmatpush1.msra.mxu0 0.0
    %294 = vmatprep.subr.mxu0 0.0
    %295 = vmatpush1.msra.mxu0 0.0
    %296 = vmatprep.subr.mxu0 0.0
    %297 = vmatpush1.msra.mxu0 0.0
    %298 = vmatprep.subr.mxu0 0.0
    %299 = vmatpush1.msra.mxu0 0.0
    %300 = vmatprep.subr.mxu0 0.0
    %301 = vmatpush1.msra.mxu0 0.0
    %302 = vmatprep.subr.mxu0 0.0
    %303 = vmatpush1.msra.mxu0 0.0
    %304 = vmatprep.subr.mxu0 0.0
    %305 = vmatpush1.msra.mxu0 0.0
    %306 = vmatprep.subr.mxu0 0.0
    %307 = vmatpush1.msra.mxu0 0.0
    %308 = vmatprep.subr.mxu0 0.0
    %309 = vmatpush1.msra.mxu0 0.0
    %310 = vmatprep.subr.mxu0 0.0
    %311 = vmatpush1.msra.mxu0 0.0
    %312 = vmatprep.subr.mxu0 0.0
    %313 = vmatpush1.msra.mxu0 %v187
    %314 = vmatprep.subr.mxu0 0.0
    %315 = vmatpush1.msra.mxu0 %v186
    %316 = vmatprep.subr.mxu0 0.0
    %317 = vmatpush1.msra.mxu0 %v185
    %318 = vmatprep.subr.mxu0 0.0
    %319 = vmatpush1.msra.mxu0 %v184
    %320 = vmatprep.subr.mxu0 0.0
    %321 = vmatpush2.msra.mxu0 0.0
    %322 = vmatprep.subr.mxu0 0.0
    %323 = vmatpush2.msra.mxu0 0.0
    %324 = vmatprep.subr.mxu0 0.0
    %325 = vmatpush2.msra.mxu0 0.0
    %326 = vmatprep.subr.mxu0 0.0
    %327 = vmatpush2.msra.mxu0 0.0
    %328 = vmatprep.subr.mxu0 0.0
    %329 = vmatpush2.msra.mxu0 0.0
    %330 = vmatprep.subr.mxu0 0.0
    %331 = vmatpush2.msra.mxu0 0.0
    %332 = vmatprep.subr.mxu0 0.0
    %333 = vmatpush2.msra.mxu0 0.0
    %334 = vmatprep.subr.mxu0 0.0
    %335 = vmatpush2.msra.mxu0 0.0
    %336 = vmatprep.subr.mxu0 0.0
    %337 = vmatpush2.msra.mxu0 0.0
    %338 = vmatprep.subr.mxu0 0.0
    %339 = vmatpush2.msra.mxu0 0.0
    %340 = vmatprep.subr.mxu0 0.0
    %341 = vmatpush2.msra.mxu0 0.0
    %342 = vmatprep.subr.mxu0 0.0
    %343 = vmatpush2.msra.mxu0 0.0
    %344 = vmatprep.subr.mxu0 0.0
    %345 = vmatpush2.msra.mxu0 0.0
    %346 = vmatprep.subr.mxu0 0.0
    %347 = vmatpush2.msra.mxu0 0.0
    %348 = vmatprep.subr.mxu0 0.0
    %349 = vmatpush2.msra.mxu0 0.0
    %350 = vmatprep.subr.mxu0 0.0
    %351 = vmatpush2.msra.mxu0 0.0
    %352 = vmatprep.mubr.f32.mxu0 0.0
    %353 = vmatmul.mubr.f32.gmra.mxu0 %v286
    %v354 = vpop.f32.mrf.mxu0
    %v355 = vadd.f32 0.0, %v354
    %v356 = vpop.f32.mrf.mxu0
    %357 = vdwg.mxu0
    %v358 = vadd.f32 %v284, %v355
    %v359 = vtanh.pop %v358
    %v360 = vmul.f32 %v359, %v182
    %v361 = vadd.f32 %v360, %v183
    %363 = vrot.lane.b32.xlu0 %v361, 96
    %v364 = vpop.permute.xlu0 %363
    %v366 = vmul.f32 %v361, %v364
    %367 = vrot.lane.b32.xlu0 %v361, 64
    %v368 = vpop.permute.xlu0 %367
    %v370 = vmul.f32 %v277, %v368
    %v371 = vadd.f32 %v366, %v370
    %v372 = vtanh.pop %v371
    %373 = vrot.lane.b32.xlu0 %v361, 32
    %v374 = vpop.permute.xlu0 %373
    %v376 = vmul.f32 %v372, %v374
    %s377 = scalar_lea.vmem [#allocation2], 16
    %v378 = vld [vmem:[%s377] sm:$0xff]
    %v380 = vsel %vm189, %v376, 0
    %382 = vmatprep.subr.mxu0 0.0
    %383 = vmatpush1.msra.mxu0 0.0
    %384 = vmatprep.subr.mxu0 0.0
    %385 = vmatpush1.msra.mxu0 0.0
    %386 = vmatprep.subr.mxu0 0.0
    %387 = vmatpush1.msra.mxu0 0.0
    %388 = vmatprep.subr.mxu0 0.0
    %389 = vmatpush1.msra.mxu0 0.0
    %390 = vmatprep.subr.mxu0 0.0
    %391 = vmatpush1.msra.mxu0 0.0
    %392 = vmatprep.subr.mxu0 0.0
    %393 = vmatpush1.msra.mxu0 0.0
    %394 = vmatprep.subr.mxu0 0.0
    %395 = vmatpush1.msra.mxu0 0.0
    %396 = vmatprep.subr.mxu0 0.0
    %397 = vmatpush1.msra.mxu0 0.0
    %398 = vmatprep.subr.mxu0 0.0
    %399 = vmatpush1.msra.mxu0 0.0
    %400 = vmatprep.subr.mxu0 0.0
    %401 = vmatpush1.msra.mxu0 0.0
    %402 = vmatprep.subr.mxu0 0.0
    %403 = vmatpush1.msra.mxu0 0.0
    %404 = vmatprep.subr.mxu0 0.0
    %405 = vmatpush1.msra.mxu0 0.0
    %406 = vmatprep.subr.mxu0 0.0
    %407 = vmatpush1.msra.mxu0 %v187
    %408 = vmatprep.subr.mxu0 0.0
    %409 = vmatpush1.msra.mxu0 %v186
    %410 = vmatprep.subr.mxu0 0.0
    %411 = vmatpush1.msra.mxu0 %v185
    %412 = vmatprep.subr.mxu0 0.0
    %413 = vmatpush1.msra.mxu0 %v184
    %414 = vmatprep.subr.mxu0 0.0
    %415 = vmatpush2.msra.mxu0 0.0
    %416 = vmatprep.subr.mxu0 0.0
    %417 = vmatpush2.msra.mxu0 0.0
    %418 = vmatprep.subr.mxu0 0.0
    %419 = vmatpush2.msra.mxu0 0.0
    %420 = vmatprep.subr.mxu0 0.0
    %421 = vmatpush2.msra.mxu0 0.0
    %422 = vmatprep.subr.mxu0 0.0
    %423 = vmatpush2.msra.mxu0 0.0
    %424 = vmatprep.subr.mxu0 0.0
    %425 = vmatpush2.msra.mxu0 0.0
    %426 = vmatprep.subr.mxu0 0.0
    %427 = vmatpush2.msra.mxu0 0.0
    %428 = vmatprep.subr.mxu0 0.0
    %429 = vmatpush2.msra.mxu0 0.0
    %430 = vmatprep.subr.mxu0 0.0
    %431 = vmatpush2.msra.mxu0 0.0
    %432 = vmatprep.subr.mxu0 0.0
    %433 = vmatpush2.msra.mxu0 0.0
    %434 = vmatprep.subr.mxu0 0.0
    %435 = vmatpush2.msra.mxu0 0.0
    %436 = vmatprep.subr.mxu0 0.0
    %437 = vmatpush2.msra.mxu0 0.0
    %438 = vmatprep.subr.mxu0 0.0
    %439 = vmatpush2.msra.mxu0 0.0
    %440 = vmatprep.subr.mxu0 0.0
    %441 = vmatpush2.msra.mxu0 0.0
    %442 = vmatprep.subr.mxu0 0.0
    %443 = vmatpush2.msra.mxu0 0.0
    %444 = vmatprep.subr.mxu0 0.0
    %445 = vmatpush2.msra.mxu0 0.0
    %446 = vmatprep.mubr.f32.mxu0 0.0
    %447 = vmatmul.mubr.f32.gmra.mxu0 %v380
    %v448 = vpop.f32.mrf.mxu0
    %v449 = vadd.f32 0.0, %v448
    %v450 = vpop.f32.mrf.mxu0
    %451 = vdwg.mxu0
    %v452 = vadd.f32 %v378, %v449
    %v453 = vtanh.pop %v452
    %v454 = vmul.f32 %v453, %v182
    %v455 = vadd.f32 %v454, %v183
    %457 = vrot.lane.b32.xlu0 %v455, 96
    %v458 = vpop.permute.xlu0 %457
    %v460 = vmul.f32 %v455, %v458
    %461 = vrot.lane.b32.xlu0 %v455, 64
    %v462 = vpop.permute.xlu0 %461
    %v464 = vmul.f32 %v371, %v462
    %v465 = vadd.f32 %v460, %v464
    %v466 = vtanh.pop %v465
    %467 = vrot.lane.b32.xlu0 %v455, 32
    %v468 = vpop.permute.xlu0 %467
    %v470 = vmul.f32 %v466, %v468
    %s471 = scalar_lea.vmem [#allocation2], 24
    %v472 = vld [vmem:[%s471] sm:$0xff]
    %v474 = vsel %vm189, %v470, 0
    %476 = vmatprep.subr.mxu0 0.0
    %477 = vmatpush1.msra.mxu0 0.0
    %478 = vmatprep.subr.mxu0 0.0
    %479 = vmatpush1.msra.mxu0 0.0
    %480 = vmatprep.subr.mxu0 0.0
    %481 = vmatpush1.msra.mxu0 0.0
    %482 = vmatprep.subr.mxu0 0.0
    %483 = vmatpush1.msra.mxu0 0.0
    %484 = vmatprep.subr.mxu0 0.0
    %485 = vmatpush1.msra.mxu0 0.0
    %486 = vmatprep.subr.mxu0 0.0
    %487 = vmatpush1.msra.mxu0 0.0
    %488 = vmatprep.subr.mxu0 0.0
    %489 = vmatpush1.msra.mxu0 0.0
    %490 = vmatprep.subr.mxu0 0.0
    %491 = vmatpush1.msra.mxu0 0.0
    %492 = vmatprep.subr.mxu0 0.0
    %493 = vmatpush1.msra.mxu0 0.0
    %494 = vmatprep.subr.mxu0 0.0
    %495 = vmatpush1.msra.mxu0 0.0
    %496 = vmatprep.subr.mxu0 0.0
    %497 = vmatpush1.msra.mxu0 0.0
    %498 = vmatprep.subr.mxu0 0.0
    %499 = vmatpush1.msra.mxu0 0.0
    %500 = vmatprep.subr.mxu0 0.0
    %501 = vmatpush1.msra.mxu0 %v187
    %502 = vmatprep.subr.mxu0 0.0
    %503 = vmatpush1.msra.mxu0 %v186
    %504 = vmatprep.subr.mxu0 0.0
    %505 = vmatpush1.msra.mxu0 %v185
    %506 = vmatprep.subr.mxu0 0.0
    %507 = vmatpush1.msra.mxu0 %v184
    %508 = vmatprep.subr.mxu0 0.0
    %509 = vmatpush2.msra.mxu0 0.0
    %510 = vmatprep.subr.mxu0 0.0
    %511 = vmatpush2.msra.mxu0 0.0
    %512 = vmatprep.subr.mxu0 0.0
    %513 = vmatpush2.msra.mxu0 0.0
    %514 = vmatprep.subr.mxu0 0.0
    %515 = vmatpush2.msra.mxu0 0.0
    %516 = vmatprep.subr.mxu0 0.0
    %517 = vmatpush2.msra.mxu0 0.0
    %518 = vmatprep.subr.mxu0 0.0
    %519 = vmatpush2.msra.mxu0 0.0
    %520 = vmatprep.subr.mxu0 0.0
    %521 = vmatpush2.msra.mxu0 0.0
    %522 = vmatprep.subr.mxu0 0.0
    %523 = vmatpush2.msra.mxu0 0.0
    %524 = vmatprep.subr.mxu0 0.0
    %525 = vmatpush2.msra.mxu0 0.0
    %526 = vmatprep.subr.mxu0 0.0
    %527 = vmatpush2.msra.mxu0 0.0
    %528 = vmatprep.subr.mxu0 0.0
    %529 = vmatpush2.msra.mxu0 0.0
    %530 = vmatprep.subr.mxu0 0.0
    %531 = vmatpush2.msra.mxu0 0.0
    %532 = vmatprep.subr.mxu0 0.0
    %533 = vmatpush2.msra.mxu0 0.0
    %534 = vmatprep.subr.mxu0 0.0
    %535 = vmatpush2.msra.mxu0 0.0
    %536 = vmatprep.subr.mxu0 0.0
    %537 = vmatpush2.msra.mxu0 0.0
    %538 = vmatprep.subr.mxu0 0.0
    %539 = vmatpush2.msra.mxu0 0.0
    %540 = vmatprep.mubr.f32.mxu0 0.0
    %541 = vmatmul.mubr.f32.gmra.mxu0 %v474
    %v542 = vpop.f32.mrf.mxu0
    %v543 = vadd.f32 0.0, %v542
    %v544 = vpop.f32.mrf.mxu0
    %545 = vdwg.mxu0
    %v546 = vadd.f32 %v472, %v543
    %v547 = vtanh.pop %v546
    %v548 = vmul.f32 %v547, %v182
    %v549 = vadd.f32 %v548, %v183
    %551 = vrot.lane.b32.xlu0 %v549, 96
    %v552 = vpop.permute.xlu0 %551
    %v554 = vmul.f32 %v549, %v552
    %555 = vrot.lane.b32.xlu0 %v549, 64
    %v556 = vpop.permute.xlu0 %555
    %v558 = vmul.f32 %v465, %v556
    %v559 = vadd.f32 %v554, %v558
    %v560 = vtanh.pop %v559
    %561 = vrot.lane.b32.xlu0 %v549, 32
    %v562 = vpop.permute.xlu0 %561
    %v564 = vmul.f32 %v560, %v562
    %s565 = scalar_lea.vmem [#allocation2], 32
    %v566 = vld [vmem:[%s565] sm:$0xff]
    %v568 = vsel %vm189, %v564, 0
    %570 = vmatprep.subr.mxu0 0.0
    %571 = vmatpush1.msra.mxu0 0.0
    %572 = vmatprep.subr.mxu0 0.0
    %573 = vmatpush1.msra.mxu0 0.0
    %574 = vmatprep.subr.mxu0 0.0
    %575 = vmatpush1.msra.mxu0 0.0
    %576 = vmatprep.subr.mxu0 0.0
    %577 = vmatpush1.msra.mxu0 0.0
    %578 = vmatprep.subr.mxu0 0.0
    %579 = vmatpush1.msra.mxu0 0.0
    %580 = vmatprep.subr.mxu0 0.0
    %581 = vmatpush1.msra.mxu0 0.0
    %582 = vmatprep.subr.mxu0 0.0
    %583 = vmatpush1.msra.mxu0 0.0
    %584 = vmatprep.subr.mxu0 0.0
    %585 = vmatpush1.msra.mxu0 0.0
    %586 = vmatprep.subr.mxu0 0.0
    %587 = vmatpush1.msra.mxu0 0.0
    %588 = vmatprep.subr.mxu0 0.0
    %589 = vmatpush1.msra.mxu0 0.0
    %590 = vmatprep.subr.mxu0 0.0
    %591 = vmatpush1.msra.mxu0 0.0
    %592 = vmatprep.subr.mxu0 0.0
    %593 = vmatpush1.msra.mxu0 0.0
    %594 = vmatprep.subr.mxu0 0.0
    %595 = vmatpush1.msra.mxu0 %v187
    %596 = vmatprep.subr.mxu0 0.0
    %597 = vmatpush1.msra.mxu0 %v186
    %598 = vmatprep.subr.mxu0 0.0
    %599 = vmatpush1.msra.mxu0 %v185
    %600 = vmatprep.subr.mxu0 0.0
    %601 = vmatpush1.msra.mxu0 %v184
    %602 = vmatprep.subr.mxu0 0.0
    %603 = vmatpush2.msra.mxu0 0.0
    %604 = vmatprep.subr.mxu0 0.0
    %605 = vmatpush2.msra.mxu0 0.0
    %606 = vmatprep.subr.mxu0 0.0
    %607 = vmatpush2.msra.mxu0 0.0
    %608 = vmatprep.subr.mxu0 0.0
    %609 = vmatpush2.msra.mxu0 0.0
    %610 = vmatprep.subr.mxu0 0.0
    %611 = vmatpush2.msra.mxu0 0.0
    %612 = vmatprep.subr.mxu0 0.0
    %613 = vmatpush2.msra.mxu0 0.0
    %614 = vmatprep.subr.mxu0 0.0
    %615 = vmatpush2.msra.mxu0 0.0
    %616 = vmatprep.subr.mxu0 0.0
    %617 = vmatpush2.msra.mxu0 0.0
    %618 = vmatprep.subr.mxu0 0.0
    %619 = vmatpush2.msra.mxu0 0.0
    %620 = vmatprep.subr.mxu0 0.0
    %621 = vmatpush2.msra.mxu0 0.0
    %622 = vmatprep.subr.mxu0 0.0
    %623 = vmatpush2.msra.mxu0 0.0
    %624 = vmatprep.subr.mxu0 0.0
    %625 = vmatpush2.msra.mxu0 0.0
    %626 = vmatprep.subr.mxu0 0.0
    %627 = vmatpush2.msra.mxu0 0.0
    %628 = vmatprep.subr.mxu0 0.0
    %629 = vmatpush2.msra.mxu0 0.0
    %630 = vmatprep.subr.mxu0 0.0
    %631 = vmatpush2.msra.mxu0 0.0
    %632 = vmatprep.subr.mxu0 0.0
    %633 = vmatpush2.msra.mxu0 0.0
    %634 = vmatprep.mubr.f32.mxu0 0.0
    %635 = vmatmul.mubr.f32.gmra.mxu0 %v568
    %v636 = vpop.f32.mrf.mxu0
    %v637 = vadd.f32 0.0, %v636
    %v638 = vpop.f32.mrf.mxu0
    %639 = vdwg.mxu0
    %v640 = vadd.f32 %v566, %v637
    %v641 = vtanh.pop %v640
    %v642 = vmul.f32 %v641, %v182
    %v643 = vadd.f32 %v642, %v183
    %645 = vrot.lane.b32.xlu0 %v643, 96
    %v646 = vpop.permute.xlu0 %645
    %v648 = vmul.f32 %v643, %v646
    %649 = vrot.lane.b32.xlu0 %v643, 64
    %v650 = vpop.permute.xlu0 %649
    %v652 = vmul.f32 %v559, %v650
    %v653 = vadd.f32 %v648, %v652
    %v654 = vtanh.pop %v653
    %655 = vrot.lane.b32.xlu0 %v643, 32
    %v656 = vpop.permute.xlu0 %655
    %v658 = vmul.f32 %v654, %v656
    %s659 = scalar_lea.vmem [#allocation2], 40
    %v660 = vld [vmem:[%s659] sm:$0xff]
    %v662 = vsel %vm189, %v658, 0
    %664 = vmatprep.subr.mxu0 0.0
    %665 = vmatpush1.msra.mxu0 0.0
    %666 = vmatprep.subr.mxu0 0.0
    %667 = vmatpush1.msra.mxu0 0.0
    %668 = vmatprep.subr.mxu0 0.0
    %669 = vmatpush1.msra.mxu0 0.0
    %670 = vmatprep.subr.mxu0 0.0
    %671 = vmatpush1.msra.mxu0 0.0
    %672 = vmatprep.subr.mxu0 0.0
    %673 = vmatpush1.msra.mxu0 0.0
    %674 = vmatprep.subr.mxu0 0.0
    %675 = vmatpush1.msra.mxu0 0.0
    %676 = vmatprep.subr.mxu0 0.0
    %677 = vmatpush1.msra.mxu0 0.0
    %678 = vmatprep.subr.mxu0 0.0
    %679 = vmatpush1.msra.mxu0 0.0
    %680 = vmatprep.subr.mxu0 0.0
    %681 = vmatpush1.msra.mxu0 0.0
    %682 = vmatprep.subr.mxu0 0.0
    %683 = vmatpush1.msra.mxu0 0.0
    %684 = vmatprep.subr.mxu0 0.0
    %685 = vmatpush1.msra.mxu0 0.0
    %686 = vmatprep.subr.mxu0 0.0
    %687 = vmatpush1.msra.mxu0 0.0
    %688 = vmatprep.subr.mxu0 0.0
    %689 = vmatpush1.msra.mxu0 %v187
    %690 = vmatprep.subr.mxu0 0.0
    %691 = vmatpush1.msra.mxu0 %v186
    %692 = vmatprep.subr.mxu0 0.0
    %693 = vmatpush1.msra.mxu0 %v185
    %694 = vmatprep.subr.mxu0 0.0
    %695 = vmatpush1.msra.mxu0 %v184
    %696 = vmatprep.subr.mxu0 0.0
    %697 = vmatpush2.msra.mxu0 0.0
    %698 = vmatprep.subr.mxu0 0.0
    %699 = vmatpush2.msra.mxu0 0.0
    %700 = vmatprep.subr.mxu0 0.0
    %701 = vmatpush2.msra.mxu0 0.0
    %702 = vmatprep.subr.mxu0 0.0
    %703 = vmatpush2.msra.mxu0 0.0
    %704 = vmatprep.subr.mxu0 0.0
    %705 = vmatpush2.msra.mxu0 0.0
    %706 = vmatprep.subr.mxu0 0.0
    %707 = vmatpush2.msra.mxu0 0.0
    %708 = vmatprep.subr.mxu0 0.0
    %709 = vmatpush2.msra.mxu0 0.0
    %710 = vmatprep.subr.mxu0 0.0
    %711 = vmatpush2.msra.mxu0 0.0
    %712 = vmatprep.subr.mxu0 0.0
    %713 = vmatpush2.msra.mxu0 0.0
    %714 = vmatprep.subr.mxu0 0.0
    %715 = vmatpush2.msra.mxu0 0.0
    %716 = vmatprep.subr.mxu0 0.0
    %717 = vmatpush2.msra.mxu0 0.0
    %718 = vmatprep.subr.mxu0 0.0
    %719 = vmatpush2.msra.mxu0 0.0
    %720 = vmatprep.subr.mxu0 0.0
    %721 = vmatpush2.msra.mxu0 0.0
    %722 = vmatprep.subr.mxu0 0.0
    %723 = vmatpush2.msra.mxu0 0.0
    %724 = vmatprep.subr.mxu0 0.0
    %725 = vmatpush2.msra.mxu0 0.0
    %726 = vmatprep.subr.mxu0 0.0
    %727 = vmatpush2.msra.mxu0 0.0
    %728 = vmatprep.mubr.f32.mxu0 0.0
    %729 = vmatmul.mubr.f32.gmra.mxu0 %v662
    %v730 = vpop.f32.mrf.mxu0
    %v731 = vadd.f32 0.0, %v730
    %v732 = vpop.f32.mrf.mxu0
    %733 = vdwg.mxu0
    %v734 = vadd.f32 %v660, %v731
    %v735 = vtanh.pop %v734
    %v736 = vmul.f32 %v735, %v182
    %v737 = vadd.f32 %v736, %v183
    %739 = vrot.lane.b32.xlu0 %v737, 96
    %v740 = vpop.permute.xlu0 %739
    %v742 = vmul.f32 %v737, %v740
    %743 = vrot.lane.b32.xlu0 %v737, 64
    %v744 = vpop.permute.xlu0 %743
    %v746 = vmul.f32 %v653, %v744
    %v747 = vadd.f32 %v742, %v746
    %v748 = vtanh.pop %v747
    %749 = vrot.lane.b32.xlu0 %v737, 32
    %v750 = vpop.permute.xlu0 %749
    %v752 = vmul.f32 %v748, %v750
    %s753 = scalar_lea.vmem [#allocation2], 48
    %v754 = vld [vmem:[%s753] sm:$0xff]
    %v756 = vsel %vm189, %v752, 0
    %758 = vmatprep.subr.mxu0 0.0
    %759 = vmatpush1.msra.mxu0 0.0
    %760 = vmatprep.subr.mxu0 0.0
    %761 = vmatpush1.msra.mxu0 0.0
    %762 = vmatprep.subr.mxu0 0.0
    %763 = vmatpush1.msra.mxu0 0.0
    %764 = vmatprep.subr.mxu0 0.0
    %765 = vmatpush1.msra.mxu0 0.0
    %766 = vmatprep.subr.mxu0 0.0
    %767 = vmatpush1.msra.mxu0 0.0
    %768 = vmatprep.subr.mxu0 0.0
    %769 = vmatpush1.msra.mxu0 0.0
    %770 = vmatprep.subr.mxu0 0.0
    %771 = vmatpush1.msra.mxu0 0.0
    %772 = vmatprep.subr.mxu0 0.0
    %773 = vmatpush1.msra.mxu0 0.0
    %774 = vmatprep.subr.mxu0 0.0
    %775 = vmatpush1.msra.mxu0 0.0
    %776 = vmatprep.subr.mxu0 0.0
    %777 = vmatpush1.msra.mxu0 0.0
    %778 = vmatprep.subr.mxu0 0.0
    %779 = vmatpush1.msra.mxu0 0.0
    %780 = vmatprep.subr.mxu0 0.0
    %781 = vmatpush1.msra.mxu0 0.0
    %782 = vmatprep.subr.mxu0 0.0
    %783 = vmatpush1.msra.mxu0 %v187
    %784 = vmatprep.subr.mxu0 0.0
    %785 = vmatpush1.msra.mxu0 %v186
    %786 = vmatprep.subr.mxu0 0.0
    %787 = vmatpush1.msra.mxu0 %v185
    %788 = vmatprep.subr.mxu0 0.0
    %789 = vmatpush1.msra.mxu0 %v184
    %790 = vmatprep.subr.mxu0 0.0
    %791 = vmatpush2.msra.mxu0 0.0
    %792 = vmatprep.subr.mxu0 0.0
    %793 = vmatpush2.msra.mxu0 0.0
    %794 = vmatprep.subr.mxu0 0.0
    %795 = vmatpush2.msra.mxu0 0.0
    %796 = vmatprep.subr.mxu0 0.0
    %797 = vmatpush2.msra.mxu0 0.0
    %798 = vmatprep.subr.mxu0 0.0
    %799 = vmatpush2.msra.mxu0 0.0
    %800 = vmatprep.subr.mxu0 0.0
    %801 = vmatpush2.msra.mxu0 0.0
    %802 = vmatprep.subr.mxu0 0.0
    %803 = vmatpush2.msra.mxu0 0.0
    %804 = vmatprep.subr.mxu0 0.0
    %805 = vmatpush2.msra.mxu0 0.0
    %806 = vmatprep.subr.mxu0 0.0
    %807 = vmatpush2.msra.mxu0 0.0
    %808 = vmatprep.subr.mxu0 0.0
    %809 = vmatpush2.msra.mxu0 0.0
    %810 = vmatprep.subr.mxu0 0.0
    %811 = vmatpush2.msra.mxu0 0.0
    %812 = vmatprep.subr.mxu0 0.0
    %813 = vmatpush2.msra.mxu0 0.0
    %814 = vmatprep.subr.mxu0 0.0
    %815 = vmatpush2.msra.mxu0 0.0
    %816 = vmatprep.subr.mxu0 0.0
    %817 = vmatpush2.msra.mxu0 0.0
    %818 = vmatprep.subr.mxu0 0.0
    %819 = vmatpush2.msra.mxu0 0.0
    %820 = vmatprep.subr.mxu0 0.0
    %821 = vmatpush2.msra.mxu0 0.0
    %822 = vmatprep.mubr.f32.mxu0 0.0
    %823 = vmatmul.mubr.f32.gmra.mxu0 %v756
    %v824 = vpop.f32.mrf.mxu0
    %v825 = vadd.f32 0.0, %v824
    %v826 = vpop.f32.mrf.mxu0
    %827 = vdwg.mxu0
    %v828 = vadd.f32 %v754, %v825
    %v829 = vtanh.pop %v828
    %v830 = vmul.f32 %v829, %v182
    %v831 = vadd.f32 %v830, %v183
    %833 = vrot.lane.b32.xlu0 %v831, 96
    %v834 = vpop.permute.xlu0 %833
    %v836 = vmul.f32 %v831, %v834
    %837 = vrot.lane.b32.xlu0 %v831, 64
    %v838 = vpop.permute.xlu0 %837
    %v840 = vmul.f32 %v747, %v838
    %v841 = vadd.f32 %v836, %v840
    %v842 = vtanh.pop %v841
    %843 = vrot.lane.b32.xlu0 %v831, 32
    %v844 = vpop.permute.xlu0 %843
    %v846 = vmul.f32 %v842, %v844
    %s847 = scalar_lea.vmem [#allocation2], 56
    %v848 = vld [vmem:[%s847] sm:$0xff]
    %v850 = vsel %vm189, %v846, 0
    %852 = vmatprep.subr.mxu0 0.0
    %853 = vmatpush1.msra.mxu0 0.0
    %854 = vmatprep.subr.mxu0 0.0
    %855 = vmatpush1.msra.mxu0 0.0
    %856 = vmatprep.subr.mxu0 0.0
    %857 = vmatpush1.msra.mxu0 0.0
    %858 = vmatprep.subr.mxu0 0.0
    %859 = vmatpush1.msra.mxu0 0.0
    %860 = vmatprep.subr.mxu0 0.0
    %861 = vmatpush1.msra.mxu0 0.0
    %862 = vmatprep.subr.mxu0 0.0
    %863 = vmatpush1.msra.mxu0 0.0
    %864 = vmatprep.subr.mxu0 0.0
    %865 = vmatpush1.msra.mxu0 0.0
    %866 = vmatprep.subr.mxu0 0.0
    %867 = vmatpush1.msra.mxu0 0.0
    %868 = vmatprep.subr.mxu0 0.0
    %869 = vmatpush1.msra.mxu0 0.0
    %870 = vmatprep.subr.mxu0 0.0
    %871 = vmatpush1.msra.mxu0 0.0
    %872 = vmatprep.subr.mxu0 0.0
    %873 = vmatpush1.msra.mxu0 0.0
    %874 = vmatprep.subr.mxu0 0.0
    %875 = vmatpush1.msra.mxu0 0.0
    %876 = vmatprep.subr.mxu0 0.0
    %877 = vmatpush1.msra.mxu0 %v187
    %878 = vmatprep.subr.mxu0 0.0
    %879 = vmatpush1.msra.mxu0 %v186
    %880 = vmatprep.subr.mxu0 0.0
    %881 = vmatpush1.msra.mxu0 %v185
    %882 = vmatprep.subr.mxu0 0.0
    %883 = vmatpush1.msra.mxu0 %v184
    %884 = vmatprep.subr.mxu0 0.0
    %885 = vmatpush2.msra.mxu0 0.0
    %886 = vmatprep.subr.mxu0 0.0
    %887 = vmatpush2.msra.mxu0 0.0
    %888 = vmatprep.subr.mxu0 0.0
    %889 = vmatpush2.msra.mxu0 0.0
    %890 = vmatprep.subr.mxu0 0.0
    %891 = vmatpush2.msra.mxu0 0.0
    %892 = vmatprep.subr.mxu0 0.0
    %893 = vmatpush2.msra.mxu0 0.0
    %894 = vmatprep.subr.mxu0 0.0
    %895 = vmatpush2.msra.mxu0 0.0
    %896 = vmatprep.subr.mxu0 0.0
    %897 = vmatpush2.msra.mxu0 0.0
    %898 = vmatprep.subr.mxu0 0.0
    %899 = vmatpush2.msra.mxu0 0.0
    %900 = vmatprep.subr.mxu0 0.0
    %901 = vmatpush2.msra.mxu0 0.0
    %902 = vmatprep.subr.mxu0 0.0
    %903 = vmatpush2.msra.mxu0 0.0
    %904 = vmatprep.subr.mxu0 0.0
    %905 = vmatpush2.msra.mxu0 0.0
    %906 = vmatprep.subr.mxu0 0.0
    %907 = vmatpush2.msra.mxu0 0.0
    %908 = vmatprep.subr.mxu0 0.0
    %909 = vmatpush2.msra.mxu0 0.0
    %910 = vmatprep.subr.mxu0 0.0
    %911 = vmatpush2.msra.mxu0 0.0
    %912 = vmatprep.subr.mxu0 0.0
    %913 = vmatpush2.msra.mxu0 0.0
    %914 = vmatprep.subr.mxu0 0.0
    %915 = vmatpush2.msra.mxu0 0.0
    %916 = vmatprep.mubr.f32.mxu0 0.0
    %917 = vmatmul.mubr.f32.gmra.mxu0 %v850
    %v918 = vpop.f32.mrf.mxu0
    %v919 = vadd.f32 0.0, %v918
    %v920 = vpop.f32.mrf.mxu0
    %921 = vdwg.mxu0
    %v922 = vadd.f32 %v848, %v919
    %v923 = vtanh.pop %v922
    %v924 = vmul.f32 %v923, %v182
    %v925 = vadd.f32 %v924, %v183
    %927 = vrot.lane.b32.xlu0 %v925, 96
    %v928 = vpop.permute.xlu0 %927
    %v930 = vmul.f32 %v925, %v928
    %931 = vrot.lane.b32.xlu0 %v925, 64
    %v932 = vpop.permute.xlu0 %931
    %v934 = vmul.f32 %v841, %v932
    %v935 = vadd.f32 %v930, %v934
    %v936 = vtanh.pop %v935
    %937 = vrot.lane.b32.xlu0 %v925, 32
    %v938 = vpop.permute.xlu0 %937
    %v940 = vmul.f32 %v936, %v938
    %v941 = vld [vmem:[%s4] sm:$0xff]
    %v942 = vld [vmem:[%s4 + $0x8] sm:$0xff]
    %v943 = vld [vmem:[%s4 + $0x10] sm:$0xff]
    %v944 = vld [vmem:[%s4 + $0x18] sm:$0xff]
    %v945 = vld [vmem:[%s5] sm:$0x1]
    %v947 = vlaneseq
    %v948 = vshrl.u32 %v947, 7
    %v949 = vsub.s32 0, %v948
    %v950 = vrot.slane %v945, %v949
    %v953 = vsel %vm189, %v940, 0
    %955 = vmatprep.subr.mxu0 0.0
    %956 = vmatpush1.msra.mxu0 0.0
    %957 = vmatprep.subr.mxu0 0.0
    %958 = vmatpush1.msra.mxu0 0.0
    %959 = vmatprep.subr.mxu0 0.0
    %960 = vmatpush1.msra.mxu0 0.0
    %961 = vmatprep.subr.mxu0 0.0
    %962 = vmatpush1.msra.mxu0 0.0
    %963 = vmatprep.subr.mxu0 0.0
    %964 = vmatpush1.msra.mxu0 0.0
    %965 = vmatprep.subr.mxu0 0.0
    %966 = vmatpush1.msra.mxu0 0.0
    %967 = vmatprep.subr.mxu0 0.0
    %968 = vmatpush1.msra.mxu0 0.0
    %969 = vmatprep.subr.mxu0 0.0
    %970 = vmatpush1.msra.mxu0 0.0
    %971 = vmatprep.subr.mxu0 0.0
    %972 = vmatpush1.msra.mxu0 0.0
    %973 = vmatprep.subr.mxu0 0.0
    %974 = vmatpush1.msra.mxu0 0.0
    %975 = vmatprep.subr.mxu0 0.0
    %976 = vmatpush1.msra.mxu0 0.0
    %977 = vmatprep.subr.mxu0 0.0
    %978 = vmatpush1.msra.mxu0 0.0
    %979 = vmatprep.subr.mxu0 0.0
    %980 = vmatpush1.msra.mxu0 %v944
    %981 = vmatprep.subr.mxu0 0.0
    %982 = vmatpush1.msra.mxu0 %v943
    %983 = vmatprep.subr.mxu0 0.0
    %984 = vmatpush1.msra.mxu0 %v942
    %985 = vmatprep.subr.mxu0 0.0
    %986 = vmatpush1.msra.mxu0 %v941
    %987 = vmatprep.subr.mxu0 0.0
    %988 = vmatpush2.msra.mxu0 0.0
    %989 = vmatprep.subr.mxu0 0.0
    %990 = vmatpush2.msra.mxu0 0.0
    %991 = vmatprep.subr.mxu0 0.0
    %992 = vmatpush2.msra.mxu0 0.0
    %993 = vmatprep.subr.mxu0 0.0
    %994 = vmatpush2.msra.mxu0 0.0
    %995 = vmatprep.subr.mxu0 0.0
    %996 = vmatpush2.msra.mxu0 0.0
    %997 = vmatprep.subr.mxu0 0.0
    %998 = vmatpush2.msra.mxu0 0.0
    %999 = vmatprep.subr.mxu0 0.0
    %1000 = vmatpush2.msra.mxu0 0.0
    %1001 = vmatprep.subr.mxu0 0.0
    %1002 = vmatpush2.msra.mxu0 0.0
    %1003 = vmatprep.subr.mxu0 0.0
    %1004 = vmatpush2.msra.mxu0 0.0
    %1005 = vmatprep.subr.mxu0 0.0
    %1006 = vmatpush2.msra.mxu0 0.0
    %1007 = vmatprep.subr.mxu0 0.0
    %1008 = vmatpush2.msra.mxu0 0.0
    %1009 = vmatprep.subr.mxu0 0.0
    %1010 = vmatpush2.msra.mxu0 0.0
    %1011 = vmatprep.subr.mxu0 0.0
    %1012 = vmatpush2.msra.mxu0 0.0
    %1013 = vmatprep.subr.mxu0 0.0
    %1014 = vmatpush2.msra.mxu0 0.0
    %1015 = vmatprep.subr.mxu0 0.0
    %1016 = vmatpush2.msra.mxu0 0.0
    %1017 = vmatprep.subr.mxu0 0.0
    %1018 = vmatpush2.msra.mxu0 0.0
    %1019 = vmatprep.mubr.f32.mxu0 0.0
    %1020 = vmatmul.mubr.f32.gmra.mxu0 %v953
    %v1021 = vpop.f32.mrf.mxu0
    %v1022 = vadd.f32 %v950, %v1021
    %v1023 = vpop.f32.mrf.mxu0
    %1024 = vdwg.mxu0
    %1025 = vst [vmem:[#allocation3] sm:$0xff] %v1022
    // Predicated region
    $region26: #{tpu_custom_call.1} parent=1 // pred_check
      _
    $region27: #{tpu_custom_call.1} parent=1 // pred_check_branch
      %1027 = sbr.rel (0) target = $region29
    $region28: #{tpu_custom_call.1} parent=1 // pred_region
      %s1029 = ssub.s32 128, 128
      %1030 = vsyncadd [#allocation4], %s1029
      %s1032 = sshll.u32 [#allocation3], 4
      %s1033 = int_to_ptr.vmem [resolvable:$true] %s1032
      %1035 = dma.vmem_to_hbm [thread:$0]  %s1033, 128, %s6, [#allocation4]
    $region29: #{tpu_custom_call.1} parent=1 // pred_fallthru
      _
    // Predicated region
    $region30: #{tpu_custom_call.1} parent=1 // pred_check
      _
    $region31: #{tpu_custom_call.1} parent=1 // pred_check_branch
      %1037 = sbr.rel (0) target = $region33
    $region32: #{tpu_custom_call.1} parent=1 // pred_region
      %1038 = dma.done [#allocation4], 128
    $region33: #{tpu_custom_call.1} parent=1 // pred_fallthru
      _
    %1039 = vsyncpa [#allocation4], 1

</llo_original>
